<compile_context>
chip_gen: v5e
topology: v5e:2x2
jax: 0.10.0
libtpu: 0.0.40
codegen_flags: <defaults>
</compile_context>

<pallas_src>
import functools

import jax
import jax.numpy as jnp
from jax.experimental import pallas as pl
from jax.experimental.pallas import tpu as pltpu


LANE = 128            # TPU lane width: pad feature dims to multiples of this
MAX_TILE_B = 512      # cap on the batch tile (rows); multiple of 16 (bf16 packing)


def _round_up(n, m):
    return (n + m - 1) // m * m


def _default_elemwise_dtype():
    """bf16 bias-add/ReLU on v6e/v7x (bf16 VALU); f32 on v5 family (no bf16 VPU)."""
    try:
        kind = jax.devices()[0].device_kind.lower()
    except Exception:
        kind = ""
    return jnp.float32 if "v5" in kind else jnp.bfloat16


def _choose_tiling(batch):
    """Adaptive batch tile: multiple of 16, >=2 grid steps once batch >= 32,
    tiles up to MAX_TILE_B rows; padding waste is always < one tile."""
    b = max(int(batch), 1)
    tile = 16
    for cand in (32, 64, 128, 256, MAX_TILE_B):
        if cand * 2 <= b:
            tile = cand
    return _round_up(b, tile), tile


# ------------------------------------------------------------------ kernel ---

def _fused_kernel(x_ref, w1_ref, b1_ref, wo_ref, bo_ref, out_ref, *, ew):
    """out = relu(x @ W1 + b1) @ [W2 | W2@Wc] + [b2 | b2@Wc + bc].

    Matmul operands are bf16 (MXU-native), accumulation is f32; bias-add/ReLU
    run in `ew` (bf16 on v6e/v7x, f32 on v5e).  Zero padding of the contracted
    dims does not change the math.
    """
    h = jnp.dot(x_ref[...], w1_ref[...], preferred_element_type=jnp.float32)
    h = jnp.maximum(h.astype(ew) + b1_ref[...], 0.0).astype(jnp.bfloat16)
    o = jnp.dot(h, wo_ref[...], preferred_element_type=jnp.float32)
    out_ref[...] = (o.astype(ew) + bo_ref[...]).astype(out_ref.dtype)


# ---------------------------------------------------------------- wrappers ---

@functools.partial(jax.jit,
                   static_argnames=("latent", "num_classes", "elemwise_dtype"))
def _forward_padded(x, w1p, b1p, wop, bop, *, latent, num_classes, elemwise_dtype):
    batch, in_dim = x.shape
    in_p, hid_p = w1p.shape
    out_p = wop.shape[1]

    batch_p, tile_b = _choose_tiling(batch)
    xp = jnp.pad(x, ((0, batch_p - batch), (0, in_p - in_dim))).astype(jnp.bfloat16)

    def row_spec(cols):                         # batch-tiled inputs/outputs
        return pl.BlockSpec((tile_b, cols), lambda i: (i, 0))

    def const_spec(shape):                      # VMEM-resident across grid steps
        return pl.BlockSpec(shape, lambda i: (0, 0))

    ew_bytes = jnp.dtype(elemwise_dtype).itemsize
    flops = 2 * batch_p * (in_p * hid_p + hid_p * out_p)
    bytes_accessed = (batch_p * in_p * 2                       # x (bf16)
                      + (in_p * hid_p + hid_p * out_p) * 2     # weights (bf16)
                      + (hid_p + out_p) * ew_bytes             # biases
                      + batch_p * out_p * 2)                   # fused output (bf16)

    out = pl.pallas_call(
        functools.partial(_fused_kernel, ew=elemwise_dtype),
        out_shape=jax.ShapeDtypeStruct((batch_p, out_p), jnp.bfloat16),
        grid=(batch_p // tile_b,),
        in_specs=[row_spec(in_p),
                  const_spec((in_p, hid_p)), const_spec((1, hid_p)),
                  const_spec((hid_p, out_p)), const_spec((1, out_p))],
        out_specs=row_spec(out_p),
        compiler_params=pltpu.CompilerParams(
            dimension_semantics=("parallel",)),
        cost_estimate=pl.CostEstimate(flops=flops, transcendentals=0,
                                      bytes_accessed=bytes_accessed),
    )(xp, w1p, b1p, wop, bop)

    z = out[:batch, :latent].astype(jnp.float32)
    y = out[:batch, latent:latent + num_classes].astype(jnp.float32)
    return z, y


def prepare_params(params, elemwise_dtype=None):
    """One-time parameter prep (hoisted out of the per-call path):
    fold the classifier Linear into the encoder's output Linear, pad everything
    to lane-dense (multiple-of-128) shapes, and cast to MXU/VPU dtypes."""
    w1, b1, w2, b2, wc, bc = params
    ew = elemwise_dtype if elemwise_dtype is not None else _default_elemwise_dtype()

    in_dim, hidden = w1.shape
    latent = w2.shape[1]
    num_classes = wc.shape[1]

    # [z | logits] = h @ [W2 | W2 @ Wc] + [b2 | b2 @ Wc + bc]
    w_out = jnp.concatenate([w2, w2 @ wc], axis=1)          # (hidden, latent+classes)
    b_out = jnp.concatenate([b2, b2 @ wc + bc], axis=1)     # (1, latent+classes)

    in_p = _round_up(in_dim, LANE)
    hid_p = _round_up(hidden, LANE)
    out_p = _round_up(latent + num_classes, LANE)

    def pad2(a, rows, cols):
        return jnp.pad(a, ((0, rows - a.shape[0]), (0, cols - a.shape[1])))

    w1p = pad2(w1, in_p, hid_p).astype(jnp.bfloat16)
    b1p = pad2(b1, 1, hid_p).astype(ew)
    wop = pad2(w_out, hid_p, out_p).astype(jnp.bfloat16)
    bop = pad2(b_out, 1, out_p).astype(ew)

    meta = dict(latent=latent, num_classes=num_classes, elemwise_dtype=ew)
    return (w1p, b1p, wop, bop), meta


def classifier_forward_with_latent(x, prepared):
    """Single fused Pallas call returning (z, logits)."""
    (w1p, b1p, wop, bop), meta = prepared
    return _forward_padded(x, w1p, b1p, wop, bop,
                           latent=meta["latent"],
                           num_classes=meta["num_classes"],
                           elemwise_dtype=meta["elemwise_dtype"])


def classifier_forward(x, prepared):
    """Classifier.forward: logits."""
    return classifier_forward_with_latent(x, prepared)[1]


def classifier_forward_latent(x, prepared):
    """Classifier.forward_latent: latent z (same fused kernel, no re-encode)."""
    return classifier_forward_with_latent(x, prepared)[0]


# ------------------------------------------------------------------- setup ---

def init_params(key, in_dim, hidden, latent, num_classes):
    """Deterministic synthetic parameter init (reset_parameters analogue)."""
    k1, k2, k3 = jax.random.split(key, 3)
    w1 = jax.random.normal(k1, (in_dim, hidden), jnp.float32) * (1.0 / jnp.sqrt(in_dim))
    b1 = jnp.zeros((1, hidden), jnp.float32) + 0.01
    w2 = jax.random.normal(k2, (hidden, latent), jnp.float32) * (1.0 / jnp.sqrt(hidden))
    b2 = jnp.zeros((1, latent), jnp.float32) + 0.01
    wc = jax.random.normal(k3, (latent, num_classes), jnp.float32) * (1.0 / jnp.sqrt(latent))
    bc = jnp.zeros((1, num_classes), jnp.float32)
    return (w1, b1, w2, b2, wc, bc)


def reference_forward(x, params):
    w1, b1, w2, b2, wc, bc = params
    h = jnp.maximum(x @ w1 + b1, 0.0)
    z = h @ w2 + b2
    return z, z @ wc + bc


if __name__ == "__main__":
    batch, in_dim, hidden, latent, num_classes = 8, 32, 64, 16, 10

    key = jax.random.PRNGKey(0)
    kx, kp = jax.random.split(key)
    x = jax.random.normal(kx, (batch, in_dim), jnp.float32)
    params = init_params(kp, in_dim, hidden, latent, num_classes)

    # one-time parameter prep (fold + pad + cast) outside the per-call path
    prepared = prepare_params(params)

    # fused forward: latent + logits from one Pallas call
    z, y_hat = classifier_forward_with_latent(x, prepared)
    z = jax.block_until_ready(z)
    y_hat = jax.block_until_ready(y_hat)

    # module-style entry points (reuse the same fused kernel)
    y_only = jax.block_until_ready(classifier_forward(x, prepared))
    z_only = jax.block_until_ready(classifier_forward_latent(x, prepared))

    # correctness check against a pure-JAX f32 reference
    # (bf16 MXU operands, bf16 output storage -> loosened tolerance)
    z_ref, y_ref = reference_forward(x, params)
    assert y_hat.shape == (batch, num_classes)
    assert z.shape == (batch, latent)
    assert jnp.allclose(y_hat, y_ref, atol=5e-2, rtol=5e-2)
    assert jnp.allclose(z, z_ref, atol=5e-2, rtol=5e-2)
    assert jnp.allclose(y_only, y_hat) and jnp.allclose(z_only, z)

    print("KERNEL_OK")
</pallas_src>

<mosaic_0001>
module attributes {stable_mosaic.version = 11 : i64} {
  func.func @_fused_kernel(%arg0: i32, %arg1: memref<16x128xbf16, #tpu.memory_space<vmem>>, %arg2: memref<128x128xbf16, #tpu.memory_space<vmem>>, %arg3: memref<1x128xbf16, #tpu.memory_space<vmem>>, %arg4: memref<128x128xbf16, #tpu.memory_space<vmem>>, %arg5: memref<1x128xbf16, #tpu.memory_space<vmem>>, %arg6: memref<16x128xbf16, #tpu.memory_space<vmem>>) attributes {dimension_semantics = [#tpu.dimension_semantics<parallel>], iteration_bounds = array<i64: 1>, scalar_prefetch = 0 : i64, scratch_operands = 0 : i64, tpu.core_type = #tpu.core_type<tc>, window_params = [{transform_indices = @transform_0, window_bounds = array<i64: 16, 128>}, {pipeline_mode = #tpu.pipeline_mode<synchronous>, transform_indices = @transform_1, window_bounds = array<i64: 128, 128>}, {pipeline_mode = #tpu.pipeline_mode<synchronous>, transform_indices = @transform_2, window_bounds = array<i64: 1, 128>}, {pipeline_mode = #tpu.pipeline_mode<synchronous>, transform_indices = @transform_3, window_bounds = array<i64: 128, 128>}, {pipeline_mode = #tpu.pipeline_mode<synchronous>, transform_indices = @transform_4, window_bounds = array<i64: 1, 128>}, {transform_indices = @transform_5, window_bounds = array<i64: 16, 128>}]} {
    %c0 = arith.constant 0 : index
    %c0_0 = arith.constant 0 : index
    %0 = vector.load %arg1[%c0, %c0_0] : memref<16x128xbf16, #tpu.memory_space<vmem>>, vector<16x128xbf16>
    %c0_1 = arith.constant 0 : index
    %c0_2 = arith.constant 0 : index
    %1 = vector.load %arg2[%c0_1, %c0_2] : memref<128x128xbf16, #tpu.memory_space<vmem>>, vector<128x128xbf16>
    %cst = arith.constant dense<0.000000e+00> : vector<16x128xf32>
    %2 = tpu.matmul %0, %1, %cst {dimension_numbers = #tpu.dot_dimension_numbers<[1], [0], [0], [1], [0, 0, 1, 1], [], []>} : vector<16x128xbf16>, vector<128x128xbf16>, vector<16x128xf32> -> vector<16x128xf32>
    %3 = arith.truncf %2 : vector<16x128xf32> to vector<16x128xbf16>
    %c0_3 = arith.constant 0 : index
    %c0_4 = arith.constant 0 : index
    %4 = vector.load %arg3[%c0_3, %c0_4] : memref<1x128xbf16, #tpu.memory_space<vmem>>, vector<1x128xbf16>
    %5 = vector.broadcast %4 : vector<1x128xbf16> to vector<16x128xbf16>
    %6 = arith.addf %3, %5 : vector<16x128xbf16>
    %cst_5 = arith.constant 0.000000e+00 : bf16
    %7 = vector.broadcast %cst_5 : bf16 to vector<16x128xbf16>
    %8 = arith.maximumf %6, %7 : vector<16x128xbf16>
    %c0_6 = arith.constant 0 : index
    %c0_7 = arith.constant 0 : index
    %9 = vector.load %arg4[%c0_6, %c0_7] : memref<128x128xbf16, #tpu.memory_space<vmem>>, vector<128x128xbf16>
    %cst_8 = arith.constant dense<0.000000e+00> : vector<16x128xf32>
    %10 = tpu.matmul %8, %9, %cst_8 {dimension_numbers = #tpu.dot_dimension_numbers<[1], [0], [0], [1], [0, 0, 1, 1], [], []>} : vector<16x128xbf16>, vector<128x128xbf16>, vector<16x128xf32> -> vector<16x128xf32>
    %11 = arith.truncf %10 : vector<16x128xf32> to vector<16x128xbf16>
    %c0_9 = arith.constant 0 : index
    %c0_10 = arith.constant 0 : index
    %12 = vector.load %arg5[%c0_9, %c0_10] : memref<1x128xbf16, #tpu.memory_space<vmem>>, vector<1x128xbf16>
    %13 = vector.broadcast %12 : vector<1x128xbf16> to vector<16x128xbf16>
    %14 = arith.addf %11, %13 : vector<16x128xbf16>
    %c0_11 = arith.constant 0 : index
    %c0_12 = arith.constant 0 : index
    %15 = vector.load %arg6[%c0_11, %c0_12] : memref<16x128xbf16, #tpu.memory_space<vmem>>, vector<16x128xbf16>
    tpu.vector_store %arg6[%c0_11, %c0_12], %14 {strides = array<i32>} : memref<16x128xbf16, #tpu.memory_space<vmem>>, vector<16x128xbf16>,
    return
  }
  func.func @transform_0(%arg0: i32) -> (i32, i32) {
    %c0_i32 = arith.constant 0 : i32
    %c0_i32_0 = arith.constant 0 : i32
    return %arg0, %c0_i32 : i32, i32
  }
  func.func @transform_1(%arg0: i32) -> (i32, i32) {
    %c0_i32 = arith.constant 0 : i32
    %c0_i32_0 = arith.constant 0 : i32
    %c0_i32_1 = arith.constant 0 : i32
    return %c0_i32, %c0_i32_0 : i32, i32
  }
  func.func @transform_2(%arg0: i32) -> (i32, i32) {
    %c0_i32 = arith.constant 0 : i32
    %c0_i32_0 = arith.constant 0 : i32
    %c0_i32_1 = arith.constant 0 : i32
    return %c0_i32, %c0_i32_0 : i32, i32
  }
  func.func @transform_3(%arg0: i32) -> (i32, i32) {
    %c0_i32 = arith.constant 0 : i32
    %c0_i32_0 = arith.constant 0 : i32
    %c0_i32_1 = arith.constant 0 : i32
    return %c0_i32, %c0_i32_0 : i32, i32
  }
  func.func @transform_4(%arg0: i32) -> (i32, i32) {
    %c0_i32 = arith.constant 0 : i32
    %c0_i32_0 = arith.constant 0 : i32
    %c0_i32_1 = arith.constant 0 : i32
    return %c0_i32, %c0_i32_0 : i32, i32
  }
  func.func @transform_5(%arg0: i32) -> (i32, i32) {
    %c0_i32 = arith.constant 0 : i32
    %c0_i32_0 = arith.constant 0 : i32
    return %arg0, %c0_i32 : i32, i32
  }
}

</mosaic_0001>

<llo_original>
// kernel: _forward_padded.1
$region0: #{_forward_padded.1}
  #allocation0 [shape = 'u32[]', space=smem, size = 0x4, offset = 0x4, fixed_abs, tag = 'smem constant byte address 0x4 - core index']
  #allocation1 [shape = 'u32[72,128]{1,0:T(1,128)}', space=vmem, size = 0x9000, scoped, tag = 'internal scratch']
  %s0 = inlined_call_operand.vmem [shape: bf16[16,128], index: 0, kind: input, shape index: {}]
  %s1 = inlined_call_operand.hbm [shape: bf16[128,128], index: 1, kind: input, shape index: {}]
  %s2 = inlined_call_operand.vmem [shape: bf16[1,128], index: 2, kind: input, shape index: {}]
  %s3 = inlined_call_operand.hbm [shape: bf16[128,128], index: 3, kind: input, shape index: {}]
  %s4 = inlined_call_operand.vmem [shape: bf16[1,128], index: 4, kind: input, shape index: {}]
  %s5 = inlined_call_operand.vmem [shape: bf16[16,128], index: 5, kind: output, shape index: {}]
  %s6 = sld [smem:[#allocation0]]
  $region38: #{_forward_padded.1} parent=0
    _
  %s8 = ssub.s32 1, %s6
  %s9 = scalar_select 0, %s8, %s6
  $region1: #{_forward_padded.1} parent=0
    #allocation2 [shape = 'u8[32768]{0}', space=vmem, size = 0x8000, scoped, tag = 'input window, operand 1, single buffered']
    #allocation3 [shape = 's32[1]{0}', space=sflag, size = 0x4, scoped, tag = 'scoped memory for _forward_padded.1']
    #allocation4 [shape = 'u8[32768]{0}', space=vmem, size = 0x8000, scoped, tag = 'input window, operand 3, single buffered']
    #allocation5 [shape = 's32[1]{0}', space=sflag, size = 0x4, scoped, tag = 'scoped memory for _forward_padded.1']
    %10 = vsyncpa [#allocation3], 0
    %11 = vsyncpa [#allocation5], 0
    // Predicated region
    $region2: #{_forward_padded.1} parent=1 // pred_check
      _
    $region3: #{_forward_padded.1} parent=1 // pred_check_branch
      %13 = sbr.rel (0) target = $region5
    $region4: #{_forward_padded.1} parent=1 // pred_region
      _
    $region5: #{_forward_padded.1} parent=1 // pred_fallthru
      _
    // Predicated region
    $region6: #{_forward_padded.1} parent=1 // pred_check
      _
    $region7: #{_forward_padded.1} parent=1 // pred_check_branch
      %15 = sbr.rel (0) target = $region9
    $region8: #{_forward_padded.1} parent=1 // pred_region
      %17 = vsyncadd [#allocation3], 0
      %s18 = sshll.u32 %s1, 4
      %s19 = int_to_ptr.hbm [resolvable:$true] %s18
      %s20 = sshll.u32 [#allocation2], 4
      %s21 = int_to_ptr.vmem [resolvable:$true] %s20
      %26 = dma.hbm_to_vmem [thread:$0]  %s19, 1024, %s21, [#allocation3], 64, 64, 4
    $region9: #{_forward_padded.1} parent=1 // pred_fallthru
      _
    // Predicated region
    $region10: #{_forward_padded.1} parent=1 // pred_check
      _
    $region11: #{_forward_padded.1} parent=1 // pred_check_branch
      %28 = sbr.rel (0) target = $region13
    $region12: #{_forward_padded.1} parent=1 // pred_region
      _
    $region13: #{_forward_padded.1} parent=1 // pred_fallthru
      _
    // Predicated region
    $region14: #{_forward_padded.1} parent=1 // pred_check
      _
    $region15: #{_forward_padded.1} parent=1 // pred_check_branch
      %30 = sbr.rel (0) target = $region17
    $region16: #{_forward_padded.1} parent=1 // pred_region
      %32 = vsyncadd [#allocation5], 0
      %s33 = sshll.u32 %s3, 4
      %s34 = int_to_ptr.hbm [resolvable:$true] %s33
      %s35 = sshll.u32 [#allocation4], 4
      %s36 = int_to_ptr.vmem [resolvable:$true] %s35
      %41 = dma.hbm_to_vmem [thread:$0]  %s34, 1024, %s36, [#allocation5], 64, 64, 4
    $region17: #{_forward_padded.1} parent=1 // pred_fallthru
      _
    // Predicated region
    $region18: #{_forward_padded.1} parent=1 // pred_check
      _
    $region19: #{_forward_padded.1} parent=1 // pred_check_branch
      %43 = sbr.rel (0) target = $region21
    $region20: #{_forward_padded.1} parent=1 // pred_region
      _
    $region21: #{_forward_padded.1} parent=1 // pred_fallthru
      _
    // Predicated region
    $region22: #{_forward_padded.1} parent=1 // pred_check
      _
    $region23: #{_forward_padded.1} parent=1 // pred_check_branch
      %45 = sbr.rel (0) target = $region25
    $region24: #{_forward_padded.1} parent=1 // pred_region
      %47 = dma.done [#allocation3], 1024
    $region25: #{_forward_padded.1} parent=1 // pred_fallthru
      _
    // Predicated region
    $region26: #{_forward_padded.1} parent=1 // pred_check
      _
    $region27: #{_forward_padded.1} parent=1 // pred_check_branch
      %49 = sbr.rel (0) target = $region29
    $region28: #{_forward_padded.1} parent=1 // pred_region
      %51 = dma.done [#allocation5], 1024
    $region29: #{_forward_padded.1} parent=1 // pred_fallthru
      _
    %v52 = vld [vmem:[%s0] sm:$0xf]
    %v53 = vld [vmem:[%s0 + $0x4] sm:$0xf]
    %v54 = vld [vmem:[#allocation2] sm:$0xf]
    %v55 = vld [vmem:[#allocation2 + $0x4] sm:$0xf]
    %v56 = vld [vmem:[#allocation2 + $0x8] sm:$0xf]
    %v57 = vld [vmem:[#allocation2 + $0xc] sm:$0xf]
    %v58 = vld [vmem:[#allocation2 + $0x10] sm:$0xf]
    %v59 = vld [vmem:[#allocation2 + $0x14] sm:$0xf]
    %v60 = vld [vmem:[#allocation2 + $0x18] sm:$0xf]
    %v61 = vld [vmem:[#allocation2 + $0x1c] sm:$0xf]
    %v62 = vld [vmem:[#allocation2 + $0x20] sm:$0xf]
    %v63 = vld [vmem:[#allocation2 + $0x24] sm:$0xf]
    %v64 = vld [vmem:[#allocation2 + $0x28] sm:$0xf]
    %v65 = vld [vmem:[#allocation2 + $0x2c] sm:$0xf]
    %v66 = vld [vmem:[#allocation2 + $0x30] sm:$0xf]
    %v67 = vld [vmem:[#allocation2 + $0x34] sm:$0xf]
    %v68 = vld [vmem:[#allocation2 + $0x38] sm:$0xf]
    %v69 = vld [vmem:[#allocation2 + $0x3c] sm:$0xf]
    %v72 = vunpack.c.l.b16 %v52
    %v73 = vunpack.c.l.b16 %v53
    %v74 = vpack.c.b16 %v73, %v72
    %v92 = vunpack.c.l.b16 %v54
    %v93 = vunpack.c.l.b16 %v55
    %v94 = vunpack.c.l.b16 %v56
    %v95 = vunpack.c.l.b16 %v57
    %v96 = vunpack.c.l.b16 %v58
    %v97 = vunpack.c.l.b16 %v59
    %v98 = vunpack.c.l.b16 %v60
    %v99 = vunpack.c.l.b16 %v61
    %v100 = vunpack.c.l.b16 %v62
    %v101 = vunpack.c.l.b16 %v63
    %v102 = vunpack.c.l.b16 %v64
    %v103 = vunpack.c.l.b16 %v65
    %v104 = vunpack.c.l.b16 %v66
    %v105 = vunpack.c.l.b16 %v67
    %v106 = vunpack.c.l.b16 %v68
    %v107 = vunpack.c.l.b16 %v69
    %v108 = vpack.c.b16 %v93, %v92
    %v109 = vpack.c.b16 %v95, %v94
    %v110 = vpack.c.b16 %v97, %v96
    %v111 = vpack.c.b16 %v99, %v98
    %v112 = vpack.c.b16 %v101, %v100
    %v113 = vpack.c.b16 %v103, %v102
    %v114 = vpack.c.b16 %v105, %v104
    %v115 = vpack.c.b16 %v107, %v106
    %124 = vmatpush.bf16.msra.mxu0 %v115
    %125 = vmatpush.bf16.msra.mxu0 %v114
    %126 = vmatpush.bf16.msra.mxu0 %v113
    %127 = vmatpush.bf16.msra.mxu0 %v112
    %128 = vmatpush.bf16.msra.mxu0 %v111
    %129 = vmatpush.bf16.msra.mxu0 %v110
    %130 = vmatpush.bf16.msra.mxu0 %v109
    %131 = vmatpush.bf16.msra.mxu0 %v108
    %132 = vmatmul.bf16.gmra.mxu0 %v74
    %v133 = vpop.f32.mrf.mxu0
    %v134 = vadd.f32 0.0, %v133
    %v135 = vpop.f32.mrf.mxu0
    %v136 = vadd.f32 0.0, %v135
    %137 = vdwg.mxu0
    %v138 = vpack.c.bf16 %v134, %v134
    %v139 = vpack.c.bf16 %v136, %v136
    %v140 = vld [vmem:[%s2] sm:$0x1]
    %v142 = vpack.i.b16 %v140, %v140
    %v144 = vperm.slane %v142, 0
    %v145 = vunpack.c.l.bf16 %v138
    %v146 = vunpack.c.l.bf16 %v139
    %v147 = vunpack.c.l.bf16 %v144
    %v148 = vadd.f32 %v145, %v147
    %v149 = vadd.f32 %v146, %v147
    %v150 = vpack.c.bf16 %v148, %v148
    %v151 = vpack.c.bf16 %v149, %v149
    %v152 = vunpack.c.l.bf16 %v150
    %v153 = vunpack.c.l.bf16 %v151
    %v154 = vmax.f32 %v152, 0.0
    %v155 = vmax.f32 %v153, 0.0
    %v156 = vpack.c.bf16 %v155, %v154
    %v157 = vld [vmem:[#allocation4] sm:$0xf]
    %v158 = vld [vmem:[#allocation4 + $0x4] sm:$0xf]
    %v159 = vld [vmem:[#allocation4 + $0x8] sm:$0xf]
    %v160 = vld [vmem:[#allocation4 + $0xc] sm:$0xf]
    %v161 = vld [vmem:[#allocation4 + $0x10] sm:$0xf]
    %v162 = vld [vmem:[#allocation4 + $0x14] sm:$0xf]
    %v163 = vld [vmem:[#allocation4 + $0x18] sm:$0xf]
    %v164 = vld [vmem:[#allocation4 + $0x1c] sm:$0xf]
    %v165 = vld [vmem:[#allocation4 + $0x20] sm:$0xf]
    %v166 = vld [vmem:[#allocation4 + $0x24] sm:$0xf]
    %v167 = vld [vmem:[#allocation4 + $0x28] sm:$0xf]
    %v168 = vld [vmem:[#allocation4 + $0x2c] sm:$0xf]
    %v169 = vld [vmem:[#allocation4 + $0x30] sm:$0xf]
    %v170 = vld [vmem:[#allocation4 + $0x34] sm:$0xf]
    %v171 = vld [vmem:[#allocation4 + $0x38] sm:$0xf]
    %v172 = vld [vmem:[#allocation4 + $0x3c] sm:$0xf]
    %v189 = vunpack.c.l.b16 %v157
    %v190 = vunpack.c.l.b16 %v158
    %v191 = vunpack.c.l.b16 %v159
    %v192 = vunpack.c.l.b16 %v160
    %v193 = vunpack.c.l.b16 %v161
    %v194 = vunpack.c.l.b16 %v162
    %v195 = vunpack.c.l.b16 %v163
    %v196 = vunpack.c.l.b16 %v164
    %v197 = vunpack.c.l.b16 %v165
    %v198 = vunpack.c.l.b16 %v166
    %v199 = vunpack.c.l.b16 %v167
    %v200 = vunpack.c.l.b16 %v168
    %v201 = vunpack.c.l.b16 %v169
    %v202 = vunpack.c.l.b16 %v170
    %v203 = vunpack.c.l.b16 %v171
    %v204 = vunpack.c.l.b16 %v172
    %v205 = vpack.c.b16 %v190, %v189
    %v206 = vpack.c.b16 %v192, %v191
    %v207 = vpack.c.b16 %v194, %v193
    %v208 = vpack.c.b16 %v196, %v195
    %v209 = vpack.c.b16 %v198, %v197
    %v210 = vpack.c.b16 %v200, %v199
    %v211 = vpack.c.b16 %v202, %v201
    %v212 = vpack.c.b16 %v204, %v203
    %221 = vmatpush.bf16.msra.mxu0 %v212
    %222 = vmatpush.bf16.msra.mxu0 %v211
    %223 = vmatpush.bf16.msra.mxu0 %v210
    %224 = vmatpush.bf16.msra.mxu0 %v209
    %225 = vmatpush.bf16.msra.mxu0 %v208
    %226 = vmatpush.bf16.msra.mxu0 %v207
    %227 = vmatpush.bf16.msra.mxu0 %v206
    %228 = vmatpush.bf16.msra.mxu0 %v205
    %229 = vmatmul.bf16.gmra.mxu0 %v156
    %v230 = vpop.f32.mrf.mxu0
    %v231 = vadd.f32 0.0, %v230
    %v232 = vpop.f32.mrf.mxu0
    %v233 = vadd.f32 0.0, %v232
    %234 = vdwg.mxu0
    %v235 = vpack.c.bf16 %v231, %v231
    %v236 = vpack.c.bf16 %v233, %v233
    %v237 = vld [vmem:[%s4] sm:$0x1]
    %v239 = vpack.i.b16 %v237, %v237
    %v241 = vperm.slane %v239, 0
    %v242 = vunpack.c.l.bf16 %v235
    %v243 = vunpack.c.l.bf16 %v236
    %v244 = vunpack.c.l.bf16 %v241
    %v245 = vadd.f32 %v242, %v244
    %v246 = vadd.f32 %v243, %v244
    %v247 = vpack.c.bf16 %v245, %v245
    %v248 = vpack.c.bf16 %v246, %v246
    %249 = vst [vmem:[%s5] sm:$0xf] %v247
    %250 = vst [vmem:[%s5 + $0x4] sm:$0xf] %v248
    // Predicated region
    $region30: #{_forward_padded.1} parent=1 // pred_check
      _
    $region31: #{_forward_padded.1} parent=1 // pred_check_branch
      %252 = sbr.rel (0) target = $region33
    $region32: #{_forward_padded.1} parent=1 // pred_region
      _
    $region33: #{_forward_padded.1} parent=1 // pred_fallthru
      _
    // Predicated region
    $region34: #{_forward_padded.1} parent=1 // pred_check
      _
    $region35: #{_forward_padded.1} parent=1 // pred_check_branch
      %254 = sbr.rel (0) target = $region37
    $region36: #{_forward_padded.1} parent=1 // pred_region
      _
    $region37: #{_forward_padded.1} parent=1 // pred_fallthru
      _
    %255 = vsyncpa [#allocation3], 1
    %256 = vsyncpa [#allocation5], 1

</llo_original>
